<compile_context>
chip_gen: v6e
topology: v6e:2x2x1
jax: 0.10.0
libtpu: 0.0.40
codegen_flags: <defaults>
</compile_context>

<pallas_src>
import jax
import jax.numpy as jnp
from jax import lax
from jax.experimental import pallas as pl
from jax.experimental.pallas import tpu as pltpu


_LANE = 128
_SUB = 8
_F32 = 4
_TARGET_X_TILE = 4 << 20   # per-buffer x tile target (bytes): 2-8 MiB sweet spot
_MAX_X_TILE = 8 << 20      # per-buffer cap before we tile the feature dim
_TOTAL_VMEM_CAP = 24 << 20 # total kernel footprint cap (fits every generation)


def _round_up(x, m):
    return -(-x // m) * m


def _plan_tiles(B, D):
    """Returns (TB, TD, footprint_bytes) honoring the (8,128)-or-full-dim rule."""
    d_pad = _round_up(D, _LANE)

    # Feature tiling only when even an 8-row full-D tile would blow the budget.
    if _SUB * d_pad * _F32 <= _MAX_X_TILE:
        td = D                       # full feature dim (exempt from /128 rule)
        td_pad = d_pad
    else:
        td = (_MAX_X_TILE // (_SUB * _F32)) // _LANE * _LANE
        td_pad = td

    row_bytes = td_pad * _F32
    if B <= _SUB:
        tb = B                       # full batch dim (exempt from /8 rule)
    else:
        tb = max(_SUB, (_TARGET_X_TILE // row_bytes) // _SUB * _SUB)
        tb = min(tb, (B // _SUB) * _SUB)

    def footprint(tb_):
        x_bytes = 2 * tb_ * row_bytes           # double-buffered x
        w_bytes = 2 * _SUB * td_pad * _F32      # (1, td) pads to 8 sublanes
        o_bytes = 2 * tb_ * _LANE * _F32        # (tb, 1) pads to 128 lanes
        a_bytes = tb_ * _LANE * _F32            # accumulator scratch
        return x_bytes + w_bytes + o_bytes + a_bytes

    while tb > _SUB and footprint(tb) > _TOTAL_VMEM_CAP:
        tb = max(_SUB, (tb // 2) // _SUB * _SUB)

    return tb, td, footprint(tb)


def _batch_axis_semantics():
    # Only CORE_PARALLEL actually splits the grid across v7x's two TensorCores;
    # on single-TC chips (v5e/v6e) plain PARALLEL is equivalent.
    try:
        kind = jax.devices()[0].device_kind.lower()
    except Exception:
        return pltpu.PARALLEL
    return pltpu.CORE_PARALLEL if "v7" in kind else pltpu.PARALLEL


def linear_forward(x, w_row, b):
    """x: (B, D) f32, w_row: (1, D) f32, b: (1, 1) f32 -> (B, 1) f32."""
    B, D = x.shape
    TB, TD, footprint = _plan_tiles(B, D)
    nb = pl.cdiv(B, TB)
    nd = pl.cdiv(D, TD)
    needs_mask = (nd > 1) and (D % TD != 0)

    def kernel(x_ref, w_ref, b_ref, o_ref, acc_ref):
        k = pl.program_id(1)

        @pl.when(k == 0)
        def _():
            acc_ref[...] = jnp.zeros_like(acc_ref)

        # Matvec as VPU multiply + lane reduction (N=1 would waste the MXU).
        prod = x_ref[...] * w_ref[...]
        if needs_mask:
            # Ragged last feature tile: zero out-of-range columns (garbage data).
            col = k * TD + lax.broadcasted_iota(jnp.int32, prod.shape, 1)
            prod = jnp.where(col < D, prod, 0.0)
        acc_ref[...] += jnp.sum(prod, axis=-1, keepdims=True)

        @pl.when(k == pl.num_programs(1) - 1)
        def _():
            o_ref[...] = (acc_ref[...] + b_ref[0, 0]).astype(o_ref.dtype)

    vmem_limit = int(max(footprint + (4 << 20), 16 << 20))

    # TODO(synk): if the caller can supply x feature-major (D, B), a lane-dense
    # (1, TB) output layout would drop the masked partial stores; and streaming
    # x/w as bf16 would ~2x the HBM-bound throughput if accuracy permits.
    return pl.pallas_call(
        kernel,
        out_shape=jax.ShapeDtypeStruct((B, 1), jnp.float32),
        grid=(nb, nd),
        in_specs=[
            # x streams over (batch, feature) tiles, double-buffered.
            pl.BlockSpec((TB, TD), lambda i, k: (i, k)),
            # Weight row: resident across batch tiles, steps along feature tiles.
            pl.BlockSpec((1, TD), lambda i, k: (0, k)),
            # Bias as an SMEM scalar (no padded VMEM tile / extra DMA pair).
            pl.BlockSpec((1, 1), lambda i, k: (0, 0),
                         memory_space=pltpu.MemorySpace.SMEM),
        ],
        out_specs=pl.BlockSpec((TB, 1), lambda i, k: (i, 0)),
        scratch_shapes=[pltpu.VMEM((TB, 1), jnp.float32)],
        compiler_params=pltpu.CompilerParams(
            dimension_semantics=(_batch_axis_semantics(), pltpu.ARBITRARY),
            vmem_limit_bytes=vmem_limit,
        ),
        cost_estimate=pl.CostEstimate(
            flops=2 * B * D,
            transcendentals=0,
            bytes_accessed=_F32 * (B * D + D + B + 1),
        ),
    )(x, w_row, b)


class DecisionTreeRegressionModelPallas:
    """JAX/Pallas port of the PyTorch module (a single Linear(input_size, 1))."""
    # Note: despite the name, the PyTorch source is a plain Linear layer.

    def __init__(self, input_size, key):
        # Deterministic init mimicking nn.Linear's U(-1/sqrt(in), 1/sqrt(in)).
        kw, kb = jax.random.split(key)
        bound = 1.0 / jnp.sqrt(jnp.float32(input_size))
        # PyTorch stores weight as (1, input_size); keep that row layout so
        # the kernel does a broadcast multiply + lane reduction.
        self.w_row = jax.random.uniform(
            kw, (1, input_size), jnp.float32, minval=-bound, maxval=bound
        )
        self.b = jax.random.uniform(
            kb, (1, 1), jnp.float32, minval=-bound, maxval=bound
        )

    def __call__(self, x):
        return linear_forward(x, self.w_row, self.b)


if __name__ == "__main__":
    key = jax.random.PRNGKey(0)
    k_param, k_x = jax.random.split(key)

    batch, input_size = 8, 32
    model = DecisionTreeRegressionModelPallas(input_size, k_param)
    x = jax.random.normal(k_x, (batch, input_size), jnp.float32)

    out = model(x)
    jax.block_until_ready(out)

    # Reference check in plain JAX.
    ref = x @ model.w_row.T + model.b
    assert out.shape == (batch, 1)
    assert jnp.allclose(out, ref, atol=1e-5), "mismatch vs reference"

    print("KERNEL_OK")
</pallas_src>

<mosaic_0001>
module attributes {stable_mosaic.version = 11 : i64} {
  func.func @kernel(%arg0: i32, %arg1: i32, %arg2: memref<8x32xf32, #tpu.memory_space<vmem>>, %arg3: memref<1x32xf32, #tpu.memory_space<vmem>>, %arg4: memref<1x1xf32, #tpu.memory_space<smem>>, %arg5: memref<8x1xf32, #tpu.memory_space<vmem>>, %arg6: memref<8x1xf32, #tpu.memory_space<vmem>>) attributes {dimension_semantics = [#tpu.dimension_semantics<parallel>, #tpu.dimension_semantics<arbitrary>], iteration_bounds = array<i64: 1, 1>, scalar_prefetch = 0 : i64, scratch_operands = 1 : i64, tpu.core_type = #tpu.core_type<tc>, window_params = [{transform_indices = @transform_0, window_bounds = array<i64: 8, 32>}, {transform_indices = @transform_1, window_bounds = array<i64: 1, 32>}, {transform_indices = @transform_2, window_bounds = array<i64: 1, 1>}, {transform_indices = @transform_3, window_bounds = array<i64: 8, 1>}]} {
    %c0_i32 = arith.constant 0 : i32
    %0 = arith.cmpi eq, %arg1, %c0_i32 : i32
    %1 = arith.extui %0 : i1 to i32
    %c0_i32_0 = arith.constant 0 : i32
    %2 = arith.cmpi ne, %1, %c0_i32_0 : i32
    scf.if %2 {
      %cst_10 = arith.constant 0.000000e+00 : f32
      %15 = vector.broadcast %cst_10 : f32 to vector<8x1xf32>
      %c0_11 = arith.constant 0 : index
      %c0_12 = arith.constant 0 : index
      %16 = vector.load %arg6[%c0_11, %c0_12] : memref<8x1xf32, #tpu.memory_space<vmem>>, vector<8x1xf32>
      tpu.vector_store %arg6[%c0_11, %c0_12], %15 {strides = array<i32>} : memref<8x1xf32, #tpu.memory_space<vmem>>, vector<8x1xf32>,
    } else {
    }
    %c0 = arith.constant 0 : index
    %c0_1 = arith.constant 0 : index
    %3 = vector.load %arg2[%c0, %c0_1] : memref<8x32xf32, #tpu.memory_space<vmem>>, vector<8x32xf32>
    %c0_2 = arith.constant 0 : index
    %c0_3 = arith.constant 0 : index
    %4 = vector.load %arg3[%c0_2, %c0_3] : memref<1x32xf32, #tpu.memory_space<vmem>>, vector<1x32xf32>
    %5 = vector.broadcast %4 : vector<1x32xf32> to vector<8x32xf32>
    %6 = arith.mulf %3, %5 : vector<8x32xf32>
    %c0_4 = arith.constant 0 : index
    %c0_5 = arith.constant 0 : index
    %7 = vector.load %arg6[%c0_4, %c0_5] : memref<8x1xf32, #tpu.memory_space<vmem>>, vector<8x1xf32>
    %cst = arith.constant dense<0.000000e+00> : vector<8xf32>
    %8 = vector.multi_reduction <add>, %6, %cst [1] : vector<8x32xf32> to vector<8xf32>
    %9 = vector.shape_cast %8 : vector<8xf32> to vector<8x1xf32>
    %10 = arith.addf %7, %9 : vector<8x1xf32>
    %c0_6 = arith.constant 0 : index
    %c0_7 = arith.constant 0 : index
    %11 = vector.load %arg6[%c0_6, %c0_7] : memref<8x1xf32, #tpu.memory_space<vmem>>, vector<8x1xf32>
    tpu.vector_store %arg6[%c0_6, %c0_7], %10 {strides = array<i32>} : memref<8x1xf32, #tpu.memory_space<vmem>>, vector<8x1xf32>,
    %c0_i32_8 = arith.constant 0 : i32
    %12 = arith.cmpi eq, %arg1, %c0_i32_8 : i32
    %13 = arith.extui %12 : i1 to i32
    %c0_i32_9 = arith.constant 0 : i32
    %14 = arith.cmpi ne, %13, %c0_i32_9 : i32
    scf.if %14 {
      %c0_10 = arith.constant 0 : index
      %c0_11 = arith.constant 0 : index
      %15 = vector.load %arg6[%c0_10, %c0_11] : memref<8x1xf32, #tpu.memory_space<vmem>>, vector<8x1xf32>
      %c0_12 = arith.constant 0 : index
      %c0_13 = arith.constant 0 : index
      %16 = memref.load %arg4[%c0_12, %c0_13] : memref<1x1xf32, #tpu.memory_space<smem>>
      %17 = vector.broadcast %16 : f32 to vector<8x1xf32>
      %18 = arith.addf %15, %17 : vector<8x1xf32>
      %c0_14 = arith.constant 0 : index
      %c0_15 = arith.constant 0 : index
      %19 = vector.load %arg5[%c0_14, %c0_15] : memref<8x1xf32, #tpu.memory_space<vmem>>, vector<8x1xf32>
      tpu.vector_store %arg5[%c0_14, %c0_15], %18 {strides = array<i32>} : memref<8x1xf32, #tpu.memory_space<vmem>>, vector<8x1xf32>,
    } else {
    }
    return
  }
  func.func @transform_0(%arg0: i32, %arg1: i32) -> (i32, i32) {
    %c0_i32 = arith.constant 0 : i32
    return %arg0, %arg1 : i32, i32
  }
  func.func @transform_1(%arg0: i32, %arg1: i32) -> (i32, i32) {
    %c0_i32 = arith.constant 0 : i32
    %c0_i32_0 = arith.constant 0 : i32
    return %c0_i32, %arg1 : i32, i32
  }
  func.func @transform_2(%arg0: i32, %arg1: i32) -> (i32, i32) {
    %c0_i32 = arith.constant 0 : i32
    %c0_i32_0 = arith.constant 0 : i32
    %c0_i32_1 = arith.constant 0 : i32
    return %c0_i32, %c0_i32_0 : i32, i32
  }
  func.func @transform_3(%arg0: i32, %arg1: i32) -> (i32, i32) {
    %c0_i32 = arith.constant 0 : i32
    %c0_i32_0 = arith.constant 0 : i32
    return %arg0, %c0_i32 : i32, i32
  }
}

</mosaic_0001>

<llo_original>
// kernel: tpu_custom_call.1
$region0: #{tpu_custom_call.1}
  #allocation0 [shape = 'u32[]', space=smem, size = 0x4, offset = 0x4, fixed_abs, tag = 'smem constant byte address 0x4 - core index']
  #allocation1 [shape = 'u32[144,128]{1,0:T(1,128)}', space=vmem, size = 0x12000, scoped, tag = 'internal scratch']
  #allocation2 [shape = 'f32[8,1]{1,0:T(8,128)}', space=vmem, size = 0x1000, scoped, tag = 'scratch operand']
  #allocation3 [shape = 'f32[1,1]{1,0:T(1,128)S(6)}', space=smem, size = 0x200, scoped, tag = 'scoped memory for tpu_custom_call.1']
  %s0 = inlined_call_operand.hbm [shape: f32[8,32], index: 0, kind: input, shape index: {}]
  %s1 = inlined_call_operand.vmem [shape: f32[1,32], index: 1, kind: input, shape index: {}]
  %s2 = inlined_call_operand.<no memory space> [shape: f32[1,1], index: 2, kind: input, shape index: {}]
  %s3 = inlined_call_operand.vmem [shape: f32[8,1], index: 3, kind: output, shape index: {}]
  %s4 = sld [smem:[#allocation0]]
  $region34: #{tpu_custom_call.1} parent=0
    _
  %s6 = ssub.s32 1, %s4
  %s7 = scalar_select 0, %s6, %s4
  %8 = sst [smem:[#allocation3]] %s2
  $region1: #{tpu_custom_call.1} parent=0
    #allocation4 [shape = 'u8[4096]{0}', space=vmem, size = 0x1000, scoped, tag = 'input window, operand 0, single buffered']
    #allocation5 [shape = 's32[1]{0}', space=sflag, size = 0x4, scoped, tag = 'scoped memory for tpu_custom_call.1']
    %9 = vsyncpa [#allocation5], 0
    // Predicated region
    $region2: #{tpu_custom_call.1} parent=1 // pred_check
      _
    $region3: #{tpu_custom_call.1} parent=1 // pred_check_branch
      %11 = sbr.rel (0) target = $region5
    $region4: #{tpu_custom_call.1} parent=1 // pred_region
      %s13 = ssub.s32 128, 128
      %14 = vsyncadd [#allocation5], %s13
      %s16 = sshll.u32 [#allocation4], 4
      %s17 = int_to_ptr.vmem [resolvable:$true] %s16
      %19 = dma.hbm_to_vmem [thread:$0]  %s0, 128, %s17, [#allocation5]
    $region5: #{tpu_custom_call.1} parent=1 // pred_fallthru
      _
    // Predicated region
    $region6: #{tpu_custom_call.1} parent=1 // pred_check
      _
    $region7: #{tpu_custom_call.1} parent=1 // pred_check_branch
      %21 = sbr.rel (0) target = $region9
    $region8: #{tpu_custom_call.1} parent=1 // pred_region
      _
    $region9: #{tpu_custom_call.1} parent=1 // pred_fallthru
      _
    // Predicated region
    $region10: #{tpu_custom_call.1} parent=1 // pred_check
      _
    $region11: #{tpu_custom_call.1} parent=1 // pred_check_branch
      %23 = sbr.rel (0) target = $region13
    $region12: #{tpu_custom_call.1} parent=1 // pred_region
      _
    $region13: #{tpu_custom_call.1} parent=1 // pred_fallthru
      _
    // Predicated region
    $region14: #{tpu_custom_call.1} parent=1 // pred_check
      _
    $region15: #{tpu_custom_call.1} parent=1 // pred_check_branch
      %25 = sbr.rel (0) target = $region17
    $region16: #{tpu_custom_call.1} parent=1 // pred_region
      %26 = dma.done [#allocation5], 128
    $region17: #{tpu_custom_call.1} parent=1 // pred_fallthru
      _
    %p27 = scmp.eq.s32.totalorder 0, 0
    // Predicated region
    $region18: #{tpu_custom_call.1} parent=1 // pred_check
      %p28 = pneg %p27
    $region19: #{tpu_custom_call.1} parent=1 // pred_check_branch
      %30 = sbr.rel (%p28) target = $region21
    $region20: #{tpu_custom_call.1} parent=1 // pred_region
      %vm31 = vcmask 7168
      %32 = vst.msk [vmem:[#allocation2] sm:$0xff] %vm31, 0.0
    $region21: #{tpu_custom_call.1} parent=1 // pred_fallthru
      _
    %v33 = vld [vmem:[#allocation4] sm:$0xff]
    %v34 = vld [vmem:[%s1] sm:$0x1]
    %v36 = vlaneseq
    %v37 = vshrl.u32 %v36, 7
    %v38 = vsub.s32 0, %v37
    %v39 = vrot.slane %v34, %v38
    %v41 = vmul.f32 %v33, %v39
    %v42 = vld [vmem:[#allocation2] sm:$0xff]
    %vm43 = vcmask 261120
    %v44 = vsel %vm43, %v41, 0.0
    %45 = vadd.xlane.f32.xlu0 %v44
    %v46 = vpop.xlane.xlu0 %45
    %v47 = vadd.f32 %v42, %v46
    %vm48 = vcmask 7168
    %49 = vst.msk [vmem:[#allocation2] sm:$0xff] %vm48, %v47
    // Predicated region
    $region22: #{tpu_custom_call.1} parent=1 // pred_check
      %p50 = pneg %p27
    $region23: #{tpu_custom_call.1} parent=1 // pred_check_branch
      %52 = sbr.rel (%p50) target = $region25
    $region24: #{tpu_custom_call.1} parent=1 // pred_region
      %v53 = vld [vmem:[#allocation2] sm:$0xff]
      %s54 = sld [smem:[#allocation3]]
      %v55 = vstv %s54
      %v56 = vadd.f32 %v53, %v55
      %57 = vst.msk [vmem:[%s3] sm:$0xff] %vm48, %v56
    $region25: #{tpu_custom_call.1} parent=1 // pred_fallthru
      _
    // Predicated region
    $region26: #{tpu_custom_call.1} parent=1 // pred_check
      _
    $region27: #{tpu_custom_call.1} parent=1 // pred_check_branch
      %59 = sbr.rel (0) target = $region29
    $region28: #{tpu_custom_call.1} parent=1 // pred_region
      _
    $region29: #{tpu_custom_call.1} parent=1 // pred_fallthru
      _
    // Predicated region
    $region30: #{tpu_custom_call.1} parent=1 // pred_check
      _
    $region31: #{tpu_custom_call.1} parent=1 // pred_check_branch
      %61 = sbr.rel (0) target = $region33
    $region32: #{tpu_custom_call.1} parent=1 // pred_region
      _
    $region33: #{tpu_custom_call.1} parent=1 // pred_fallthru
      _
    %62 = vsyncpa [#allocation5], 1

</llo_original>
